<compile_context>
chip_gen: v7x
topology: tpu7x:2x2x1
jax: 0.10.0
libtpu: 0.0.40
codegen_flags: <defaults>
</compile_context>

<pallas_src>
import jax
import jax.numpy as jnp
from jax.experimental import pallas as pl
from jax.experimental.pallas import tpu as pltpu


def _round_up(n, m):
    return ((n + m - 1) // m) * m


def mlp_kernel(x_ref, w1_ref, b1_ref, w2_ref, b2_ref, w3_ref, b3_ref, o_ref):
    # x_ref: (tb, D) bf16, w1: (D, 64) bf16, b1: (1, 64) f32,
    # w2: (64, 32) bf16, b2: (1, 32) f32, w3: (1, 32) f32 row, b3: (1, 1) f32,
    # o_ref: (1, 1, tb) f32.
    x = x_ref[...]

    # Layer 1: bf16 operands, f32 MXU accumulate; bias + ReLU in f32.
    h1 = jnp.dot(x, w1_ref[...], preferred_element_type=jnp.float32) + b1_ref[...]
    h1 = jnp.maximum(h1, 0.0)                 # ReLU (Dropout = identity in eval)

    # Layer 2: cast activations to bf16 for the MXU push, accumulate in f32.
    h2 = jnp.dot(h1.astype(jnp.bfloat16), w2_ref[...],
                 preferred_element_type=jnp.float32) + b2_ref[...]
    h2 = jnp.maximum(h2, 0.0)                 # ReLU (Dropout = identity in eval)

    # Final 32 -> 1 layer (kept f32; negligible cost): contract the 32-wide
    # hidden axis of h2 (tb, 32) against the (1, 32) w3 row, producing a
    # lane-dense (1, tb) output row instead of a (tb, 1) column.
    out_row = jax.lax.dot_general(
        w3_ref[...], h2, (((1,), (1,)), ((), ())),
        preferred_element_type=jnp.float32) + b3_ref[...]          # (1, tb)

    o_ref[...] = out_row.reshape(o_ref.shape).astype(o_ref.dtype)


def muscle_stiffness_forward(x, params, *, tb=2048):
    """x: (B, input_dim) float32. Returns (B, 1) float32."""
    w1, b1, w2, b2, w3, b3 = params
    B, D = x.shape

    # bf16 matmul operands (f32 accumulation on the MXU) for the two big
    # layers: halves x's HBM/VMEM traffic and the MXU LHS push count.
    x = x.astype(jnp.bfloat16)
    w1 = w1.astype(jnp.bfloat16)
    w2 = w2.astype(jnp.bfloat16)

    # Large lane-aligned batch tile; cap so the grid keeps >= 2 steps when
    # possible (v7x megacore), floor at one 128-row tile for tiny batches.
    tb = max(128, min(tb, _round_up(pl.cdiv(B, 2), 128)))
    G = pl.cdiv(B, tb)          # ragged: last x block over-reads; the garbage
                                # tail rows are row-independent and sliced off.

    full = lambda i: (0, 0)     # constant index_map -> weights stay VMEM-resident

    out = pl.pallas_call(
        mlp_kernel,
        out_shape=jax.ShapeDtypeStruct((G, 1, tb), jnp.float32),
        grid_spec=pltpu.PrefetchScalarGridSpec(
            num_scalar_prefetch=0,
            grid=(G,),
            in_specs=[
                pl.BlockSpec((tb, D), lambda i: (i, 0)),      # x tile (bf16)
                pl.BlockSpec((D, 64), full),                  # W1 (bf16)
                pl.BlockSpec((1, 64), full),                  # b1 (f32)
                pl.BlockSpec((64, 32), full),                 # W2 (bf16)
                pl.BlockSpec((1, 32), full),                  # b2 (f32)
                pl.BlockSpec((1, 32), full),                  # W3 row (f32)
                pl.BlockSpec((1, 1), full),                   # b3 (f32)
            ],
            out_specs=pl.BlockSpec((1, 1, tb), lambda i: (i, 0, 0)),
        ),
        compiler_params=pltpu.CompilerParams(
            dimension_semantics=("parallel",),
            vmem_limit_bytes=32 * 1024 * 1024,
        ),
    )(x, w1, b1, w2, b2, w3, b3)

    return out.reshape(G * tb, 1)[:B]


def init_params(key, input_dim):
    """Deterministic synthetic parameters (shapes match the nn.Linear layers)."""
    ks = jax.random.split(key, 6)
    w1 = jax.random.normal(ks[0], (input_dim, 64), jnp.float32) * 0.1
    b1 = jax.random.normal(ks[1], (1, 64), jnp.float32) * 0.01
    w2 = jax.random.normal(ks[2], (64, 32), jnp.float32) * 0.1
    b2 = jax.random.normal(ks[3], (1, 32), jnp.float32) * 0.01
    w3 = jax.random.normal(ks[4], (1, 32), jnp.float32) * 0.1   # PyTorch (out, in) layout
    b3 = jax.random.normal(ks[5], (1, 1), jnp.float32) * 0.01
    return (w1, b1, w2, b2, w3, b3)


def reference_forward(x, params):
    """Full-f32 reference matching the PyTorch module (eval mode)."""
    w1, b1, w2, b2, w3, b3 = params
    h1 = jnp.maximum(x @ w1 + b1, 0.0)
    h2 = jnp.maximum(h1 @ w2 + b2, 0.0)
    return h2 @ w3.T + b3


def reference_forward_bf16(x, params):
    """Reference using the same bf16-operand / f32-accumulate matmul precision
    as the kernel (tight numerical check)."""
    w1, b1, w2, b2, w3, b3 = params
    h1 = jnp.dot(x.astype(jnp.bfloat16), w1.astype(jnp.bfloat16),
                 preferred_element_type=jnp.float32) + b1
    h1 = jnp.maximum(h1, 0.0)
    h2 = jnp.dot(h1.astype(jnp.bfloat16), w2.astype(jnp.bfloat16),
                 preferred_element_type=jnp.float32) + b2
    h2 = jnp.maximum(h2, 0.0)
    return jnp.dot(h2, w3.T, preferred_element_type=jnp.float32) + b3


if __name__ == "__main__":
    key = jax.random.PRNGKey(0)
    k_x, k_p, k_x2 = jax.random.split(key, 3)

    batch, input_dim = 8, 16
    x = jax.random.normal(k_x, (batch, input_dim), jnp.float32)
    params = init_params(k_p, input_dim)

    out = jax.block_until_ready(muscle_stiffness_forward(x, params))
    assert out.shape == (batch, 1)
    assert jnp.allclose(out, reference_forward_bf16(x, params), atol=5e-3, rtol=5e-3), \
        "mismatch vs bf16 reference (small)"
    assert jnp.allclose(out, reference_forward(x, params), atol=1e-1, rtol=1e-1), \
        "mismatch vs f32 reference (small)"

    # Larger, ragged batch: multi-step grid, partial last x block, slice-back.
    batch2 = 1000
    x2 = jax.random.normal(k_x2, (batch2, input_dim), jnp.float32)
    out2 = jax.block_until_ready(muscle_stiffness_forward(x2, params))
    assert out2.shape == (batch2, 1)
    assert jnp.allclose(out2, reference_forward_bf16(x2, params), atol=5e-3, rtol=5e-3), \
        "mismatch vs bf16 reference (large)"
    assert jnp.allclose(out2, reference_forward(x2, params), atol=1e-1, rtol=1e-1), \
        "mismatch vs f32 reference (large)"

    print("KERNEL_OK")
</pallas_src>

<mosaic_0001>
module attributes {stable_mosaic.version = 11 : i64} {
  func.func @mlp_kernel(%arg0: i32, %arg1: memref<128x16xbf16, #tpu.memory_space<vmem>>, %arg2: memref<16x64xbf16, #tpu.memory_space<vmem>>, %arg3: memref<1x64xf32, #tpu.memory_space<vmem>>, %arg4: memref<64x32xbf16, #tpu.memory_space<vmem>>, %arg5: memref<1x32xf32, #tpu.memory_space<vmem>>, %arg6: memref<1x32xf32, #tpu.memory_space<vmem>>, %arg7: memref<1x1xf32, #tpu.memory_space<vmem>>, %arg8: memref<1x1x128xf32, #tpu.memory_space<vmem>>) attributes {dimension_semantics = [#tpu.dimension_semantics<parallel>], iteration_bounds = array<i64: 1>, scalar_prefetch = 0 : i64, scratch_operands = 0 : i64, tpu.core_type = #tpu.core_type<tc>, window_params = [{transform_indices = @transform_0, window_bounds = array<i64: 128, 16>}, {pipeline_mode = #tpu.pipeline_mode<synchronous>, transform_indices = @transform_1, window_bounds = array<i64: 16, 64>}, {pipeline_mode = #tpu.pipeline_mode<synchronous>, transform_indices = @transform_2, window_bounds = array<i64: 1, 64>}, {pipeline_mode = #tpu.pipeline_mode<synchronous>, transform_indices = @transform_3, window_bounds = array<i64: 64, 32>}, {pipeline_mode = #tpu.pipeline_mode<synchronous>, transform_indices = @transform_4, window_bounds = array<i64: 1, 32>}, {pipeline_mode = #tpu.pipeline_mode<synchronous>, transform_indices = @transform_5, window_bounds = array<i64: 1, 32>}, {pipeline_mode = #tpu.pipeline_mode<synchronous>, transform_indices = @transform_6, window_bounds = array<i64: 1, 1>}, {transform_indices = @transform_7, window_bounds = array<i64: 1, 1, 128>}]} {
    %c0 = arith.constant 0 : index
    %c0_0 = arith.constant 0 : index
    %0 = vector.load %arg1[%c0, %c0_0] : memref<128x16xbf16, #tpu.memory_space<vmem>>, vector<128x16xbf16>
    %c0_1 = arith.constant 0 : index
    %c0_2 = arith.constant 0 : index
    %1 = vector.load %arg2[%c0_1, %c0_2] : memref<16x64xbf16, #tpu.memory_space<vmem>>, vector<16x64xbf16>
    %cst = arith.constant dense<0.000000e+00> : vector<128x64xf32>
    %2 = tpu.matmul %0, %1, %cst {dimension_numbers = #tpu.dot_dimension_numbers<[1], [0], [0], [1], [0, 0, 1, 1], [], []>} : vector<128x16xbf16>, vector<16x64xbf16>, vector<128x64xf32> -> vector<128x64xf32>
    %c0_3 = arith.constant 0 : index
    %c0_4 = arith.constant 0 : index
    %3 = vector.load %arg3[%c0_3, %c0_4] : memref<1x64xf32, #tpu.memory_space<vmem>>, vector<1x64xf32>
    %4 = vector.broadcast %3 : vector<1x64xf32> to vector<128x64xf32>
    %5 = arith.addf %2, %4 : vector<128x64xf32>
    %cst_5 = arith.constant 0.000000e+00 : f32
    %6 = vector.broadcast %cst_5 : f32 to vector<128x64xf32>
    %7 = arith.maximumf %5, %6 : vector<128x64xf32>
    %8 = arith.truncf %7 : vector<128x64xf32> to vector<128x64xbf16>
    %c0_6 = arith.constant 0 : index
    %c0_7 = arith.constant 0 : index
    %9 = vector.load %arg4[%c0_6, %c0_7] : memref<64x32xbf16, #tpu.memory_space<vmem>>, vector<64x32xbf16>
    %cst_8 = arith.constant dense<0.000000e+00> : vector<128x32xf32>
    %10 = tpu.matmul %8, %9, %cst_8 {dimension_numbers = #tpu.dot_dimension_numbers<[1], [0], [0], [1], [0, 0, 1, 1], [], []>} : vector<128x64xbf16>, vector<64x32xbf16>, vector<128x32xf32> -> vector<128x32xf32>
    %c0_9 = arith.constant 0 : index
    %c0_10 = arith.constant 0 : index
    %11 = vector.load %arg5[%c0_9, %c0_10] : memref<1x32xf32, #tpu.memory_space<vmem>>, vector<1x32xf32>
    %12 = vector.broadcast %11 : vector<1x32xf32> to vector<128x32xf32>
    %13 = arith.addf %10, %12 : vector<128x32xf32>
    %cst_11 = arith.constant 0.000000e+00 : f32
    %14 = vector.broadcast %cst_11 : f32 to vector<128x32xf32>
    %15 = arith.maximumf %13, %14 : vector<128x32xf32>
    %c0_12 = arith.constant 0 : index
    %c0_13 = arith.constant 0 : index
    %16 = vector.load %arg6[%c0_12, %c0_13] : memref<1x32xf32, #tpu.memory_space<vmem>>, vector<1x32xf32>
    %cst_14 = arith.constant dense<0.000000e+00> : vector<1x128xf32>
    %17 = tpu.matmul %16, %15, %cst_14 {dimension_numbers = #tpu.dot_dimension_numbers<[1], [1], [0], [0], [0, 0, 1, 0], [], []>} : vector<1x32xf32>, vector<128x32xf32>, vector<1x128xf32> -> vector<1x128xf32>
    %c0_15 = arith.constant 0 : index
    %c0_16 = arith.constant 0 : index
    %18 = vector.load %arg7[%c0_15, %c0_16] : memref<1x1xf32, #tpu.memory_space<vmem>>, vector<1x1xf32>
    %19 = vector.broadcast %18 : vector<1x1xf32> to vector<1x128xf32>
    %20 = arith.addf %17, %19 : vector<1x128xf32>
    %21 = vector.shape_cast %20 : vector<1x128xf32> to vector<1x1x128xf32>
    %c0_17 = arith.constant 0 : index
    %c0_18 = arith.constant 0 : index
    %c0_19 = arith.constant 0 : index
    %22 = vector.load %arg8[%c0_17, %c0_18, %c0_19] : memref<1x1x128xf32, #tpu.memory_space<vmem>>, vector<1x1x128xf32>
    tpu.vector_store %arg8[%c0_17, %c0_18, %c0_19], %21 {strides = array<i32>} : memref<1x1x128xf32, #tpu.memory_space<vmem>>, vector<1x1x128xf32>,
    return
  }
  func.func @transform_0(%arg0: i32) -> (i32, i32) {
    %c0_i32 = arith.constant 0 : i32
    %c0_i32_0 = arith.constant 0 : i32
    return %arg0, %c0_i32 : i32, i32
  }
  func.func @transform_1(%arg0: i32) -> (i32, i32) {
    %c0_i32 = arith.constant 0 : i32
    %c0_i32_0 = arith.constant 0 : i32
    %c0_i32_1 = arith.constant 0 : i32
    return %c0_i32, %c0_i32_0 : i32, i32
  }
  func.func @transform_2(%arg0: i32) -> (i32, i32) {
    %c0_i32 = arith.constant 0 : i32
    %c0_i32_0 = arith.constant 0 : i32
    %c0_i32_1 = arith.constant 0 : i32
    return %c0_i32, %c0_i32_0 : i32, i32
  }
  func.func @transform_3(%arg0: i32) -> (i32, i32) {
    %c0_i32 = arith.constant 0 : i32
    %c0_i32_0 = arith.constant 0 : i32
    %c0_i32_1 = arith.constant 0 : i32
    return %c0_i32, %c0_i32_0 : i32, i32
  }
  func.func @transform_4(%arg0: i32) -> (i32, i32) {
    %c0_i32 = arith.constant 0 : i32
    %c0_i32_0 = arith.constant 0 : i32
    %c0_i32_1 = arith.constant 0 : i32
    return %c0_i32, %c0_i32_0 : i32, i32
  }
  func.func @transform_5(%arg0: i32) -> (i32, i32) {
    %c0_i32 = arith.constant 0 : i32
    %c0_i32_0 = arith.constant 0 : i32
    %c0_i32_1 = arith.constant 0 : i32
    return %c0_i32, %c0_i32_0 : i32, i32
  }
  func.func @transform_6(%arg0: i32) -> (i32, i32) {
    %c0_i32 = arith.constant 0 : i32
    %c0_i32_0 = arith.constant 0 : i32
    %c0_i32_1 = arith.constant 0 : i32
    return %c0_i32, %c0_i32_0 : i32, i32
  }
  func.func @transform_7(%arg0: i32) -> (i32, i32, i32) {
    %c0_i32 = arith.constant 0 : i32
    %c0_i32_0 = arith.constant 0 : i32
    %c0_i32_1 = arith.constant 0 : i32
    return %arg0, %c0_i32, %c0_i32_0 : i32, i32, i32
  }
}

</mosaic_0001>

<llo_original>
// kernel: tpu_custom_call.1
$region0: #{tpu_custom_call.1}
  #allocation0 [shape = 'u32[]', space=smem, size = 0x4, offset = 0x4, fixed_abs, tag = 'smem constant byte address 0x4 - core index']
  #allocation1 [shape = 'u32[144,128]{1,0:T(1,128)}', space=vmem, size = 0x12000, scoped, tag = 'internal scratch']
  #allocation2 [shape = 'f32[1,1]{1,0:T(1,128)S(1)}', space=vmem, size = 0x200, scoped, tag = 'scoped memory for tpu_custom_call.1']
  %s0 = inlined_call_operand.vmem [shape: bf16[8,16], index: 0, kind: input, shape index: {}]
  %s1 = inlined_call_operand.vmem [shape: bf16[16,64], index: 1, kind: input, shape index: {}]
  %s2 = inlined_call_operand.vmem [shape: f32[1,64], index: 2, kind: input, shape index: {}]
  %s3 = inlined_call_operand.vmem [shape: bf16[64,32], index: 3, kind: input, shape index: {}]
  %s4 = inlined_call_operand.vmem [shape: f32[1,32], index: 4, kind: input, shape index: {}]
  %s5 = inlined_call_operand.vmem [shape: f32[1,32], index: 5, kind: input, shape index: {}]
  %s6 = inlined_call_operand.<no memory space> [shape: f32[1,1], index: 6, kind: input, shape index: {}]
  %s7 = inlined_call_operand.hbm [shape: f32[1,1,128], index: 7, kind: output, shape index: {}]
  %s8 = sld [smem:[#allocation0]]
  $region38: #{tpu_custom_call.1} parent=0
    _
  %s10 = ssub.s32 1, %s8
  %s11 = scalar_select 0, %s10, %s8
  %v12 = vstv %s6
  %13 = vst [vmem:[#allocation2] sm:$0x1] %v12
  $region1: #{tpu_custom_call.1} parent=0
    #allocation3 [shape = 'u8[512]{0}', space=vmem, size = 0x400, scoped, tag = 'output window, operand 0, single buffered']
    #allocation4 [shape = 's32[1]{0}', space=sflag, size = 0x4, scoped, tag = 'scoped memory for tpu_custom_call.1']
    %14 = vsyncpa [#allocation4], 0
    // Predicated region
    $region2: #{tpu_custom_call.1} parent=1 // pred_check
      _
    $region3: #{tpu_custom_call.1} parent=1 // pred_check_branch
      %16 = sbr.rel (0) target = $region5
    $region4: #{tpu_custom_call.1} parent=1 // pred_region
      _
    $region5: #{tpu_custom_call.1} parent=1 // pred_fallthru
      _
    // Predicated region
    $region6: #{tpu_custom_call.1} parent=1 // pred_check
      _
    $region7: #{tpu_custom_call.1} parent=1 // pred_check_branch
      %18 = sbr.rel (0) target = $region9
    $region8: #{tpu_custom_call.1} parent=1 // pred_region
      _
    $region9: #{tpu_custom_call.1} parent=1 // pred_fallthru
      _
    // Predicated region
    $region10: #{tpu_custom_call.1} parent=1 // pred_check
      _
    $region11: #{tpu_custom_call.1} parent=1 // pred_check_branch
      %20 = sbr.rel (0) target = $region13
    $region12: #{tpu_custom_call.1} parent=1 // pred_region
      _
    $region13: #{tpu_custom_call.1} parent=1 // pred_fallthru
      _
    // Predicated region
    $region14: #{tpu_custom_call.1} parent=1 // pred_check
      _
    $region15: #{tpu_custom_call.1} parent=1 // pred_check_branch
      %22 = sbr.rel (0) target = $region17
    $region16: #{tpu_custom_call.1} parent=1 // pred_region
      _
    $region17: #{tpu_custom_call.1} parent=1 // pred_fallthru
      _
    // Predicated region
    $region18: #{tpu_custom_call.1} parent=1 // pred_check
      _
    $region19: #{tpu_custom_call.1} parent=1 // pred_check_branch
      %24 = sbr.rel (0) target = $region21
    $region20: #{tpu_custom_call.1} parent=1 // pred_region
      _
    $region21: #{tpu_custom_call.1} parent=1 // pred_fallthru
      _
    // Predicated region
    $region22: #{tpu_custom_call.1} parent=1 // pred_check
      _
    $region23: #{tpu_custom_call.1} parent=1 // pred_check_branch
      %26 = sbr.rel (0) target = $region25
    $region24: #{tpu_custom_call.1} parent=1 // pred_region
      _
    $region25: #{tpu_custom_call.1} parent=1 // pred_fallthru
      _
    // Predicated region
    $region26: #{tpu_custom_call.1} parent=1 // pred_check
      _
    $region27: #{tpu_custom_call.1} parent=1 // pred_check_branch
      %28 = sbr.rel (0) target = $region29
    $region28: #{tpu_custom_call.1} parent=1 // pred_region
      _
    $region29: #{tpu_custom_call.1} parent=1 // pred_fallthru
      _
    %v30 = vld [vmem:[%s0] sm:$0xf]
    %v31 = vld [vmem:[%s0 + $0x4] sm:$0xf]
    %v32 = vld [vmem:[%s0 + $0x8] sm:$0xf]
    %v33 = vld [vmem:[%s0 + $0xc] sm:$0xf]
    %v34 = vld [vmem:[%s0 + $0x10] sm:$0xf]
    %v35 = vld [vmem:[%s0 + $0x14] sm:$0xf]
    %v36 = vld [vmem:[%s0 + $0x18] sm:$0xf]
    %v37 = vld [vmem:[%s0 + $0x1c] sm:$0xf]
    %v38 = vld [vmem:[%s0 + $0x20] sm:$0xf]
    %v39 = vld [vmem:[%s0 + $0x24] sm:$0xf]
    %v40 = vld [vmem:[%s0 + $0x28] sm:$0xf]
    %v41 = vld [vmem:[%s0 + $0x2c] sm:$0xf]
    %v42 = vld [vmem:[%s0 + $0x30] sm:$0xf]
    %v43 = vld [vmem:[%s0 + $0x34] sm:$0xf]
    %v44 = vld [vmem:[%s0 + $0x38] sm:$0xf]
    %v45 = vld [vmem:[%s0 + $0x3c] sm:$0xf]
    %v46 = vld [vmem:[%s1] sm:$0xf]
    %v47 = vld [vmem:[%s1 + $0x4] sm:$0xf]
    %v48 = vld [vmem:[%s2] sm:$0x1]
    %v50 = vlaneseq
    %v51 = vshrl.u32 %v50, 7
    %v52 = vsub.s32 0, %v51
    %v53 = vrot.slane %v48, %v52
    %v71 = vunpack.c.l.b16 %v30
    %v72 = vunpack.c.l.b16 %v31
    %v73 = vunpack.c.l.b16 %v32
    %v74 = vunpack.c.l.b16 %v33
    %v75 = vunpack.c.l.b16 %v34
    %v76 = vunpack.c.l.b16 %v35
    %v77 = vunpack.c.l.b16 %v36
    %v78 = vunpack.c.l.b16 %v37
    %v79 = vunpack.c.l.b16 %v38
    %v80 = vunpack.c.l.b16 %v39
    %v81 = vunpack.c.l.b16 %v40
    %v82 = vunpack.c.l.b16 %v41
    %v83 = vunpack.c.l.b16 %v42
    %v84 = vunpack.c.l.b16 %v43
    %v85 = vunpack.c.l.b16 %v44
    %v86 = vunpack.c.l.b16 %v45
    %v87 = vpack.c.b16 %v72, %v71
    %v88 = vpack.c.b16 %v74, %v73
    %v89 = vpack.c.b16 %v76, %v75
    %v90 = vpack.c.b16 %v78, %v77
    %v91 = vpack.c.b16 %v80, %v79
    %v92 = vpack.c.b16 %v82, %v81
    %v93 = vpack.c.b16 %v84, %v83
    %v94 = vpack.c.b16 %v86, %v85
    %v97 = vunpack.c.l.b16 %v46
    %v98 = vunpack.c.l.b16 %v47
    %v99 = vpack.c.b16 %v98, %v97
    %vm101 = vcmask 130048
    %v103 = vsel %vm101, %v87, 0
    %v106 = vsel %vm101, %v88, 0
    %v109 = vsel %vm101, %v89, 0
    %v112 = vsel %vm101, %v90, 0
    %v115 = vsel %vm101, %v91, 0
    %v118 = vsel %vm101, %v92, 0
    %v121 = vsel %vm101, %v93, 0
    %v124 = vsel %vm101, %v94, 0
    %126 = vmatprep.subr.bf16.mxu0 0
    %127 = vmatpush1.bf16.msra.mxu0 %v99
    %128 = vmatprep.subr.bf16.mxu0 0
    %129 = vmatpush1.bf16.msra.mxu0 0
    %130 = vmatprep.subr.bf16.mxu0 0
    %131 = vmatpush1.bf16.msra.mxu0 0
    %132 = vmatprep.subr.bf16.mxu0 0
    %133 = vmatpush1.bf16.msra.mxu0 0
    %134 = vmatprep.subr.bf16.mxu0 0
    %135 = vmatpush1.bf16.msra.mxu0 0
    %136 = vmatprep.subr.bf16.mxu0 0
    %137 = vmatpush1.bf16.msra.mxu0 0
    %138 = vmatprep.subr.bf16.mxu0 0
    %139 = vmatpush1.bf16.msra.mxu0 0
    %140 = vmatprep.subr.bf16.mxu0 0
    %141 = vmatpush1.bf16.msra.mxu0 0
    %142 = vmatprep.subr.bf16.mxu0 0
    %143 = vmatpush1.bf16.msra.mxu0 0
    %144 = vmatprep.subr.bf16.mxu0 0
    %145 = vmatpush1.bf16.msra.mxu0 0
    %146 = vmatprep.subr.bf16.mxu0 0
    %147 = vmatpush1.bf16.msra.mxu0 0
    %148 = vmatprep.subr.bf16.mxu0 0
    %149 = vmatpush1.bf16.msra.mxu0 0
    %150 = vmatprep.subr.bf16.mxu0 0
    %151 = vmatpush1.bf16.msra.mxu0 0
    %152 = vmatprep.subr.bf16.mxu0 0
    %153 = vmatpush1.bf16.msra.mxu0 0
    %154 = vmatprep.subr.bf16.mxu0 0
    %155 = vmatpush1.bf16.msra.mxu0 0
    %156 = vmatprep.subr.bf16.mxu0 0
    %157 = vmatpush1.bf16.msra.mxu0 0
    %158 = vmatprep.mubr.bf16.mxu0 0
    %159 = vmatmul.mubr.bf16.gmra.mrb[0].mxu0 %v103
    %v160 = vpop.f32.mrb[0].mxu0
    %v161 = vadd.f32 %v53, %v160
    %v162 = vpop.f32.mrb[0].mxu0
    %v163 = vpop.f32.mrb[0].mxu0
    %v164 = vadd.f32 %v53, %v163
    %v165 = vpop.f32.mrb[0].mxu0
    %166 = vmatprep.mubr.bf16.mxu0 0
    %167 = vmatmul.mubr.bf16.gmra.mrb[0].mxu0 %v106
    %v168 = vpop.f32.mrb[0].mxu0
    %v169 = vadd.f32 %v53, %v168
    %v170 = vpop.f32.mrb[0].mxu0
    %v171 = vpop.f32.mrb[0].mxu0
    %v172 = vadd.f32 %v53, %v171
    %v173 = vpop.f32.mrb[0].mxu0
    %174 = vmatprep.mubr.bf16.mxu0 0
    %175 = vmatmul.mubr.bf16.gmra.mrb[0].mxu0 %v109
    %v176 = vpop.f32.mrb[0].mxu0
    %v177 = vadd.f32 %v53, %v176
    %v178 = vpop.f32.mrb[0].mxu0
    %v179 = vpop.f32.mrb[0].mxu0
    %v180 = vadd.f32 %v53, %v179
    %v181 = vpop.f32.mrb[0].mxu0
    %182 = vmatprep.mubr.bf16.mxu0 0
    %183 = vmatmul.mubr.bf16.gmra.mrb[0].mxu0 %v112
    %v184 = vpop.f32.mrb[0].mxu0
    %v185 = vadd.f32 %v53, %v184
    %v186 = vpop.f32.mrb[0].mxu0
    %v187 = vpop.f32.mrb[0].mxu0
    %v188 = vadd.f32 %v53, %v187
    %v189 = vpop.f32.mrb[0].mxu0
    %190 = vmatprep.mubr.bf16.mxu0 0
    %191 = vmatmul.mubr.bf16.gmra.mrb[0].mxu0 %v115
    %v192 = vpop.f32.mrb[0].mxu0
    %v193 = vadd.f32 %v53, %v192
    %v194 = vpop.f32.mrb[0].mxu0
    %v195 = vpop.f32.mrb[0].mxu0
    %v196 = vadd.f32 %v53, %v195
    %v197 = vpop.f32.mrb[0].mxu0
    %198 = vmatprep.mubr.bf16.mxu0 0
    %199 = vmatmul.mubr.bf16.gmra.mrb[0].mxu0 %v118
    %v200 = vpop.f32.mrb[0].mxu0
    %v201 = vadd.f32 %v53, %v200
    %v202 = vpop.f32.mrb[0].mxu0
    %v203 = vpop.f32.mrb[0].mxu0
    %v204 = vadd.f32 %v53, %v203
    %v205 = vpop.f32.mrb[0].mxu0
    %206 = vmatprep.mubr.bf16.mxu0 0
    %207 = vmatmul.mubr.bf16.gmra.mrb[0].mxu0 %v121
    %v208 = vpop.f32.mrb[0].mxu0
    %v209 = vadd.f32 %v53, %v208
    %v210 = vpop.f32.mrb[0].mxu0
    %v211 = vpop.f32.mrb[0].mxu0
    %v212 = vadd.f32 %v53, %v211
    %v213 = vpop.f32.mrb[0].mxu0
    %214 = vmatprep.mubr.bf16.mxu0 0
    %215 = vmatmul.mubr.bf16.gmra.mrb[0].mxu0 %v124
    %v216 = vpop.f32.mrb[0].mxu0
    %v217 = vadd.f32 %v53, %v216
    %v218 = vpop.f32.mrb[0].mxu0
    %v219 = vpop.f32.mrb[0].mxu0
    %v220 = vadd.f32 %v53, %v219
    %v221 = vpop.f32.mrb[0].mxu0
    %222 = vdwg.mxu0
    %v223 = vmax.f32 %v161, 0.0
    %v224 = vmax.f32 %v164, 0.0
    %v225 = vmax.f32 %v169, 0.0
    %v226 = vmax.f32 %v172, 0.0
    %v227 = vmax.f32 %v177, 0.0
    %v228 = vmax.f32 %v180, 0.0
    %v229 = vmax.f32 %v185, 0.0
    %v230 = vmax.f32 %v188, 0.0
    %v231 = vmax.f32 %v193, 0.0
    %v232 = vmax.f32 %v196, 0.0
    %v233 = vmax.f32 %v201, 0.0
    %v234 = vmax.f32 %v204, 0.0
    %v235 = vmax.f32 %v209, 0.0
    %v236 = vmax.f32 %v212, 0.0
    %v237 = vmax.f32 %v217, 0.0
    %v238 = vmax.f32 %v220, 0.0
    %v239 = vpack.c.bf16 %v224, %v223
    %v240 = vpack.c.bf16 %v226, %v225
    %v241 = vpack.c.bf16 %v228, %v227
    %v242 = vpack.c.bf16 %v230, %v229
    %v243 = vpack.c.bf16 %v232, %v231
    %v244 = vpack.c.bf16 %v234, %v233
    %v245 = vpack.c.bf16 %v236, %v235
    %v246 = vpack.c.bf16 %v238, %v237
    %v247 = vld [vmem:[%s3] sm:$0xf]
    %v248 = vld [vmem:[%s3 + $0x4] sm:$0xf]
    %v249 = vld [vmem:[%s3 + $0x8] sm:$0xf]
    %v250 = vld [vmem:[%s3 + $0xc] sm:$0xf]
    %v251 = vld [vmem:[%s3 + $0x10] sm:$0xf]
    %v252 = vld [vmem:[%s3 + $0x14] sm:$0xf]
    %v253 = vld [vmem:[%s3 + $0x18] sm:$0xf]
    %v254 = vld [vmem:[%s3 + $0x1c] sm:$0xf]
    %v255 = vld [vmem:[%s4] sm:$0x1]
    %v257 = vlaneseq
    %v258 = vshrl.u32 %v257, 7
    %v259 = vsub.s32 0, %v258
    %v260 = vrot.slane %v255, %v259
    %v270 = vunpack.c.l.b16 %v247
    %v271 = vunpack.c.l.b16 %v248
    %v272 = vunpack.c.l.b16 %v249
    %v273 = vunpack.c.l.b16 %v250
    %v274 = vunpack.c.l.b16 %v251
    %v275 = vunpack.c.l.b16 %v252
    %v276 = vunpack.c.l.b16 %v253
    %v277 = vunpack.c.l.b16 %v254
    %v278 = vpack.c.b16 %v271, %v270
    %v279 = vpack.c.b16 %v273, %v272
    %v280 = vpack.c.b16 %v275, %v274
    %v281 = vpack.c.b16 %v277, %v276
    %vm286 = vcmask 523264
    %v288 = vsel %vm286, %v239, 0
    %v291 = vsel %vm286, %v240, 0
    %v294 = vsel %vm286, %v241, 0
    %v297 = vsel %vm286, %v242, 0
    %v300 = vsel %vm286, %v243, 0
    %v303 = vsel %vm286, %v244, 0
    %v306 = vsel %vm286, %v245, 0
    %v309 = vsel %vm286, %v246, 0
    %311 = vmatprep.subr.bf16.mxu0 0
    %312 = vmatpush1.bf16.msra.mxu0 %v278
    %313 = vmatprep.subr.bf16.mxu0 0
    %314 = vmatpush1.bf16.msra.mxu0 %v279
    %315 = vmatprep.subr.bf16.mxu0 0
    %316 = vmatpush1.bf16.msra.mxu0 %v280
    %317 = vmatprep.subr.bf16.mxu0 0
    %318 = vmatpush1.bf16.msra.mxu0 %v281
    %319 = vmatprep.subr.bf16.mxu0 0
    %320 = vmatpush1.bf16.msra.mxu0 0
    %321 = vmatprep.subr.bf16.mxu0 0
    %322 = vmatpush1.bf16.msra.mxu0 0
    %323 = vmatprep.subr.bf16.mxu0 0
    %324 = vmatpush1.bf16.msra.mxu0 0
    %325 = vmatprep.subr.bf16.mxu0 0
    %326 = vmatpush1.bf16.msra.mxu0 0
    %327 = vmatprep.subr.bf16.mxu0 0
    %328 = vmatpush1.bf16.msra.mxu0 0
    %329 = vmatprep.subr.bf16.mxu0 0
    %330 = vmatpush1.bf16.msra.mxu0 0
    %331 = vmatprep.subr.bf16.mxu0 0
    %332 = vmatpush1.bf16.msra.mxu0 0
    %333 = vmatprep.subr.bf16.mxu0 0
    %334 = vmatpush1.bf16.msra.mxu0 0
    %335 = vmatprep.subr.bf16.mxu0 0
    %336 = vmatpush1.bf16.msra.mxu0 0
    %337 = vmatprep.subr.bf16.mxu0 0
    %338 = vmatpush1.bf16.msra.mxu0 0
    %339 = vmatprep.subr.bf16.mxu0 0
    %340 = vmatpush1.bf16.msra.mxu0 0
    %341 = vmatprep.subr.bf16.mxu0 0
    %342 = vmatpush1.bf16.msra.mxu0 0
    %343 = vmatprep.mubr.bf16.mxu0 0
    %344 = vmatmul.mubr.bf16.gmra.mrb[0].mxu0 %v288
    %v345 = vpop.f32.mrb[0].mxu0
    %v346 = vadd.f32 %v260, %v345
    %v347 = vpop.f32.mrb[0].mxu0
    %v348 = vpop.f32.mrb[0].mxu0
    %v349 = vadd.f32 %v260, %v348
    %v350 = vpop.f32.mrb[0].mxu0
    %351 = vmatprep.mubr.bf16.mxu0 0
    %352 = vmatmul.mubr.bf16.gmra.mrb[0].mxu0 %v291
    %v353 = vpop.f32.mrb[0].mxu0
    %v354 = vadd.f32 %v260, %v353
    %v355 = vpop.f32.mrb[0].mxu0
    %v356 = vpop.f32.mrb[0].mxu0
    %v357 = vadd.f32 %v260, %v356
    %v358 = vpop.f32.mrb[0].mxu0
    %359 = vmatprep.mubr.bf16.mxu0 0
    %360 = vmatmul.mubr.bf16.gmra.mrb[0].mxu0 %v294
    %v361 = vpop.f32.mrb[0].mxu0
    %v362 = vadd.f32 %v260, %v361
    %v363 = vpop.f32.mrb[0].mxu0
    %v364 = vpop.f32.mrb[0].mxu0
    %v365 = vadd.f32 %v260, %v364
    %v366 = vpop.f32.mrb[0].mxu0
    %367 = vmatprep.mubr.bf16.mxu0 0
    %368 = vmatmul.mubr.bf16.gmra.mrb[0].mxu0 %v297
    %v369 = vpop.f32.mrb[0].mxu0
    %v370 = vadd.f32 %v260, %v369
    %v371 = vpop.f32.mrb[0].mxu0
    %v372 = vpop.f32.mrb[0].mxu0
    %v373 = vadd.f32 %v260, %v372
    %v374 = vpop.f32.mrb[0].mxu0
    %375 = vmatprep.mubr.bf16.mxu0 0
    %376 = vmatmul.mubr.bf16.gmra.mrb[0].mxu0 %v300
    %v377 = vpop.f32.mrb[0].mxu0
    %v378 = vadd.f32 %v260, %v377
    %v379 = vpop.f32.mrb[0].mxu0
    %v380 = vpop.f32.mrb[0].mxu0
    %v381 = vadd.f32 %v260, %v380
    %v382 = vpop.f32.mrb[0].mxu0
    %383 = vmatprep.mubr.bf16.mxu0 0
    %384 = vmatmul.mubr.bf16.gmra.mrb[0].mxu0 %v303
    %v385 = vpop.f32.mrb[0].mxu0
    %v386 = vadd.f32 %v260, %v385
    %v387 = vpop.f32.mrb[0].mxu0
    %v388 = vpop.f32.mrb[0].mxu0
    %v389 = vadd.f32 %v260, %v388
    %v390 = vpop.f32.mrb[0].mxu0
    %391 = vmatprep.mubr.bf16.mxu0 0
    %392 = vmatmul.mubr.bf16.gmra.mrb[0].mxu0 %v306
    %v393 = vpop.f32.mrb[0].mxu0
    %v394 = vadd.f32 %v260, %v393
    %v395 = vpop.f32.mrb[0].mxu0
    %v396 = vpop.f32.mrb[0].mxu0
    %v397 = vadd.f32 %v260, %v396
    %v398 = vpop.f32.mrb[0].mxu0
    %399 = vmatprep.mubr.bf16.mxu0 0
    %400 = vmatmul.mubr.bf16.gmra.mrb[0].mxu0 %v309
    %v401 = vpop.f32.mrb[0].mxu0
    %v402 = vadd.f32 %v260, %v401
    %v403 = vpop.f32.mrb[0].mxu0
    %v404 = vpop.f32.mrb[0].mxu0
    %v405 = vadd.f32 %v260, %v404
    %v406 = vpop.f32.mrb[0].mxu0
    %407 = vdwg.mxu0
    %v408 = vmax.f32 %v346, 0.0
    %v409 = vmax.f32 %v349, 0.0
    %v410 = vmax.f32 %v354, 0.0
    %v411 = vmax.f32 %v357, 0.0
    %v412 = vmax.f32 %v362, 0.0
    %v413 = vmax.f32 %v365, 0.0
    %v414 = vmax.f32 %v370, 0.0
    %v415 = vmax.f32 %v373, 0.0
    %v416 = vmax.f32 %v378, 0.0
    %v417 = vmax.f32 %v381, 0.0
    %v418 = vmax.f32 %v386, 0.0
    %v419 = vmax.f32 %v389, 0.0
    %v420 = vmax.f32 %v394, 0.0
    %v421 = vmax.f32 %v397, 0.0
    %v422 = vmax.f32 %v402, 0.0
    %v423 = vmax.f32 %v405, 0.0
    %v424 = vld [vmem:[%s5] sm:$0x1]
    %v425 = vld [vmem:[#allocation2] sm:$0x1]
    %427 = vset.pattern.permute.xlu0 0
    %428 = vperm.xlu0 %427, %v425
    %v429 = vpop.permute.xlu0 %428
    %v431 = vlaneseq
    %v432 = vshrl.u32 %v431, 7
    %v433 = vsub.s32 0, %v432
    %v434 = vrot.slane %v429, %v433
    %vm435 = vcmask 261120
    %v437 = vsel %vm435, %v424, 0
    %v440 = vsel %vm435, %v408, 0
    %v443 = vsel %vm435, %v409, 0
    %v446 = vsel %vm435, %v410, 0
    %v449 = vsel %vm435, %v411, 0
    %v452 = vsel %vm435, %v412, 0
    %v455 = vsel %vm435, %v413, 0
    %v458 = vsel %vm435, %v414, 0
    %v461 = vsel %vm435, %v415, 0
    %v464 = vsel %vm435, %v416, 0
    %v467 = vsel %vm435, %v417, 0
    %v470 = vsel %vm435, %v418, 0
    %v473 = vsel %vm435, %v419, 0
    %v476 = vsel %vm435, %v420, 0
    %v479 = vsel %vm435, %v421, 0
    %v482 = vsel %vm435, %v422, 0
    %v485 = vsel %vm435, %v423, 0
    %487 = vmatprep.subr.mxu0 0.0
    %488 = vmatpush1.xpose.msra.mxu0 %v440
    %489 = vmatprep.subr.mxu0 0.0
    %490 = vmatpush1.xpose.msra.mxu0 %v443
    %491 = vmatprep.subr.mxu0 0.0
    %492 = vmatpush1.xpose.msra.mxu0 %v446
    %493 = vmatprep.subr.mxu0 0.0
    %494 = vmatpush1.xpose.msra.mxu0 %v449
    %495 = vmatprep.subr.mxu0 0.0
    %496 = vmatpush1.xpose.msra.mxu0 %v452
    %497 = vmatprep.subr.mxu0 0.0
    %498 = vmatpush1.xpose.msra.mxu0 %v455
    %499 = vmatprep.subr.mxu0 0.0
    %500 = vmatpush1.xpose.msra.mxu0 %v458
    %501 = vmatprep.subr.mxu0 0.0
    %502 = vmatpush1.xpose.msra.mxu0 %v461
    %503 = vmatprep.subr.mxu0 0.0
    %504 = vmatpush1.xpose.msra.mxu0 %v464
    %505 = vmatprep.subr.mxu0 0.0
    %506 = vmatpush1.xpose.msra.mxu0 %v467
    %507 = vmatprep.subr.mxu0 0.0
    %508 = vmatpush1.xpose.msra.mxu0 %v470
    %509 = vmatprep.subr.mxu0 0.0
    %510 = vmatpush1.xpose.msra.mxu0 %v473
    %511 = vmatprep.subr.mxu0 0.0
    %512 = vmatpush1.xpose.msra.mxu0 %v476
    %513 = vmatprep.subr.mxu0 0.0
    %514 = vmatpush1.xpose.msra.mxu0 %v479
    %515 = vmatprep.subr.mxu0 0.0
    %516 = vmatpush1.xpose.msra.mxu0 %v482
    %517 = vmatprep.subr.mxu0 0.0
    %518 = vmatpush1.xpose.msra.mxu0 %v485
    %519 = vmatprep.subr.mxu0 0.0
    %520 = vmatpush1.xpose.msra.mxu0 0.0
    %521 = vmatprep.subr.mxu0 0.0
    %522 = vmatpush1.xpose.msra.mxu0 0.0
    %523 = vmatprep.subr.mxu0 0.0
    %524 = vmatpush1.xpose.msra.mxu0 0.0
    %525 = vmatprep.subr.mxu0 0.0
    %526 = vmatpush1.xpose.msra.mxu0 0.0
    %527 = vmatprep.subr.mxu0 0.0
    %528 = vmatpush1.xpose.msra.mxu0 0.0
    %529 = vmatprep.subr.mxu0 0.0
    %530 = vmatpush1.xpose.msra.mxu0 0.0
    %531 = vmatprep.subr.mxu0 0.0
    %532 = vmatpush1.xpose.msra.mxu0 0.0
    %533 = vmatprep.subr.mxu0 0.0
    %534 = vmatpush1.xpose.msra.mxu0 0.0
    %535 = vmatprep.subr.mxu0 0.0
    %536 = vmatpush1.xpose.msra.mxu0 0.0
    %537 = vmatprep.subr.mxu0 0.0
    %538 = vmatpush1.xpose.msra.mxu0 0.0
    %539 = vmatprep.subr.mxu0 0.0
    %540 = vmatpush1.xpose.msra.mxu0 0.0
    %541 = vmatprep.subr.mxu0 0.0
    %542 = vmatpush1.xpose.msra.mxu0 0.0
    %543 = vmatprep.subr.mxu0 0.0
    %544 = vmatpush1.xpose.msra.mxu0 0.0
    %545 = vmatprep.subr.mxu0 0.0
    %546 = vmatpush1.xpose.msra.mxu0 0.0
    %547 = vmatprep.subr.mxu0 0.0
    %548 = vmatpush1.xpose.msra.mxu0 0.0
    %549 = vmatprep.subr.mxu0 0.0
    %550 = vmatpush1.xpose.msra.mxu0 0.0
    %551 = vmatprep.mubr.f32.mxu0 0.0
    %552 = vmatmul.mubr.f32.gmra.mrb[0].mxu0 %v437
    %v553 = vpop.f32.mrb[0].mxu0
    %v554 = vadd.f32 %v434, %v553
    %v555 = vpop.f32.mrb[0].mxu0
    %556 = vdwg.mxu0
    %557 = vst [vmem:[#allocation3] sm:$0x1] %v554
    // Predicated region
    $region30: #{tpu_custom_call.1} parent=1 // pred_check
      _
    $region31: #{tpu_custom_call.1} parent=1 // pred_check_branch
      %559 = sbr.rel (0) target = $region33
    $region32: #{tpu_custom_call.1} parent=1 // pred_region
      %s561 = ssub.s32 16, 16
      %562 = vsyncadd [#allocation4], %s561
      %s564 = sshll.u32 [#allocation3], 4
      %s565 = int_to_ptr.vmem [resolvable:$true] %s564
      %567 = dma.vmem_to_hbm [thread:$0]  %s565, 16, %s7, [#allocation4]
    $region33: #{tpu_custom_call.1} parent=1 // pred_fallthru
      _
    // Predicated region
    $region34: #{tpu_custom_call.1} parent=1 // pred_check
      _
    $region35: #{tpu_custom_call.1} parent=1 // pred_check_branch
      %569 = sbr.rel (0) target = $region37
    $region36: #{tpu_custom_call.1} parent=1 // pred_region
      %570 = dma.done [#allocation4], 16
    $region37: #{tpu_custom_call.1} parent=1 // pred_fallthru
      _
    %571 = vsyncpa [#allocation4], 1

</llo_original>
